<compile_context>
chip_gen: v7x
topology: tpu7x:2x2x1
jax: 0.10.0
libtpu: 0.0.40
codegen_flags: <defaults>
</compile_context>

<pallas_src>
import jax
import jax.numpy as jnp
from jax.experimental import pallas as pl
from jax.experimental.pallas import tpu as pltpu

LIMIT_A = -0.1
LIMIT_B = 1.1
_LANE = 128
_SUBLANE = 8


def _gate(qz_loga):
    """Deterministic (eval-mode) hard-concrete gate."""
    return jnp.clip(jax.nn.sigmoid(qz_loga) * (LIMIT_B - LIMIT_A) + LIMIT_A, 0.0, 1.0)


def _round_up(v, m):
    return (v + m - 1) // m * m


def l0_mlp_kernel(x_ref, w1s_ref, b1s_ref, w1p_ref, b1p_ref, w2_ref, gm_ref, o_ref):
    x = x_ref[...]                                           # (TB, Dp) f32

    # SoftsignMod(x) = (x - 0.5) / (1 + |x - 0.5|);  LogShiftedSoftSignMod = log1p(...)
    shifted = x - 0.5
    inv = pl.reciprocal(1.0 + jnp.abs(shifted), approx=True)  # EUP vrcp (free slot)
    ssm = shifted * inv
    lssm = jnp.log1p(ssm)

    # Layer 1 (gates pre-folded into weights). bf16 MXU operands, f32 accumulate.
    h_s = jnp.dot(ssm.astype(jnp.bfloat16), w1s_ref[...],
                  preferred_element_type=jnp.float32) + b1s_ref[...]          # (TB, Hp)
    h_p = jnp.exp(jnp.dot(lssm.astype(jnp.bfloat16), w1p_ref[...],
                          preferred_element_type=jnp.float32) + b1p_ref[...])  # (TB, Hp)

    # Fused layer 2: [h_s | h_p] @ [w2s ; w2p] == sums + prods  (single MXU pass).
    h_cat = jnp.concatenate([h_s, h_p], axis=1).astype(jnp.bfloat16)          # (TB, 2Hp)
    joint = jnp.dot(h_cat, w2_ref[...], preferred_element_type=jnp.float32)   # (TB, Dp)

    # gm already relu'd (and zero-padded) in the wrapper.
    o_ref[...] = gm_ref[...] * (joint - x)


def l0_mlp_forward(x, params, *, block_b=512):
    B, D = x.shape
    H = params["w1s"].shape[1]
    Dp = _round_up(D, _LANE)
    Hp = _round_up(H, _LANE)
    f32 = jnp.float32

    # Fold eval-mode gates into weights:  (x * z) @ W == x @ (diag(z) @ W).
    w1s = params["w1s"] * _gate(params["qz1s"]).reshape(D, 1)
    w1p = params["w1p"] * _gate(params["qz1p"]).reshape(D, 1)
    w2s = params["w2s"] * _gate(params["qz2s"]).reshape(H, 1)
    w2p = params["w2p"] * _gate(params["qz2p"]).reshape(H, 1)

    def pad2(a, rows, cols):
        a = a.astype(f32)
        return jnp.pad(a, ((0, rows - a.shape[0]), (0, cols - a.shape[1])))

    # Zero padding keeps padded feature/hidden columns inert (no gate leakage).
    w1s_p = pad2(w1s, Dp, Hp).astype(jnp.bfloat16)
    w1p_p = pad2(w1p, Dp, Hp).astype(jnp.bfloat16)
    w2_p = jnp.concatenate([pad2(w2s, Hp, Dp), pad2(w2p, Hp, Dp)],
                           axis=0).astype(jnp.bfloat16)                # (2Hp, Dp)
    b1s_p = pad2(params["b1s"], 1, Hp)
    b1p_p = pad2(params["b1p"], 1, Hp)
    gm_p = pad2(jnp.maximum(params["gene_multipliers"], 0.0), 1, Dp)

    # Batch tiling (>=sublane-aligned tiles; demo batch uses a single tile).
    tb = min(block_b, _round_up(B, _SUBLANE))
    Bp = _round_up(B, tb)
    x_p = jnp.pad(x.astype(f32), ((0, Bp - B), (0, Dp - D)))

    # VMEM budget: resident weights + double-buffered x/out tiles + temporaries.
    weight_bytes = 2 * (w1s_p.size + w1p_p.size + w2_p.size)            # bf16
    small_bytes = 4 * (b1s_p.size + b1p_p.size + gm_p.size)             # f32
    io_bytes = 2 * 2 * tb * Dp * 4                                      # x + out, 2x buffered
    interm_bytes = 8 * tb * max(Dp, 2 * Hp) * 4                         # kernel temporaries
    vmem_limit = int(2 * (weight_bytes + small_bytes) + io_bytes + interm_bytes + (8 << 20))
    # TODO(synk): if bf16 weights ever exceed ~40 MiB (huge D*H), stream w2 chunks with
    #             an accumulator grid axis instead of keeping them resident (v7x: 64 MiB VMEM).
    vmem_limit = min(max(vmem_limit, 32 << 20), 64 << 20)

    def const_spec(shape):
        return pl.BlockSpec(shape, lambda i: (0, 0))

    out_p = pl.pallas_call(
        l0_mlp_kernel,
        out_shape=jax.ShapeDtypeStruct((Bp, Dp), f32),
        grid=(Bp // tb,),
        in_specs=[
            pl.BlockSpec((tb, Dp), lambda i: (i, 0)),   # x tile (pipelined)
            const_spec((Dp, Hp)),                       # w1s (resident)
            const_spec((1, Hp)),                        # b1s
            const_spec((Dp, Hp)),                       # w1p
            const_spec((1, Hp)),                        # b1p
            const_spec((2 * Hp, Dp)),                   # fused [w2s ; w2p]
            const_spec((1, Dp)),                        # relu(gene_multipliers)
        ],
        out_specs=pl.BlockSpec((tb, Dp), lambda i: (i, 0)),
        compiler_params=pltpu.CompilerParams(
            dimension_semantics=("parallel",),
            vmem_limit_bytes=vmem_limit,
        ),
    )(x_p, w1s_p, b1s_p, w1p_p, b1p_p, w2_p, gm_p)

    return out_p[:B, :D]


def make_params(key, input_dim, hidden):
    ks = jax.random.split(key, 11)
    f32 = jnp.float32
    # qz_loga init mimics L0Dense: mean = log(1 - droprate) - log(droprate), std = 1e-2
    qz_mean_02 = jnp.log(0.8) - jnp.log(0.2)   # droprate_init = 0.2 (first dense of each path)
    qz_mean_05 = jnp.log(0.5) - jnp.log(0.5)   # droprate_init = 0.5 (second dense of each path)
    params = {
        # sums path
        "w1s": (jax.random.normal(ks[0], (input_dim, hidden), f32)
                * jnp.sqrt(2.0 / input_dim)),
        "b1s": jnp.zeros((1, hidden), f32),
        "qz1s": qz_mean_02 + 1e-2 * jax.random.normal(ks[1], (1, input_dim), f32),
        "w2s": (jax.random.normal(ks[2], (hidden, input_dim), f32)
                * jnp.sqrt(2.0 / hidden)),
        "qz2s": qz_mean_05 + 1e-2 * jax.random.normal(ks[3], (1, hidden), f32),
        # prods path
        "w1p": (jax.random.normal(ks[4], (input_dim, hidden), f32)
                * jnp.sqrt(2.0 / input_dim)),
        "b1p": jnp.zeros((1, hidden), f32),
        "qz1p": qz_mean_02 + 1e-2 * jax.random.normal(ks[5], (1, input_dim), f32),
        "w2p": (jax.random.normal(ks[6], (hidden, input_dim), f32)
                * jnp.sqrt(2.0 / hidden)),
        "qz2p": qz_mean_05 + 1e-2 * jax.random.normal(ks[7], (1, hidden), f32),
        # torch.rand(1, input_dim)
        "gene_multipliers": jax.random.uniform(ks[8], (1, input_dim), f32),
    }
    return params


def l0_mlp_reference(x, params):
    """Pure-JAX f32 reference (same math, no Pallas / no bf16) for correctness check."""
    shifted = x - 0.5
    ssm = shifted / (1.0 + jnp.abs(shifted))
    h_s = (ssm * _gate(params["qz1s"])) @ params["w1s"] + params["b1s"]
    sums = (h_s * _gate(params["qz2s"])) @ params["w2s"]
    lssm = jnp.log1p(ssm)
    h_p = (lssm * _gate(params["qz1p"])) @ params["w1p"] + params["b1p"]
    h_p = jnp.exp(h_p)
    prods = (h_p * _gate(params["qz2p"])) @ params["w2p"]
    joint = prods + sums
    return jnp.maximum(params["gene_multipliers"], 0.0) * (joint - x)


if __name__ == "__main__":
    key = jax.random.PRNGKey(0)
    k_x, k_p = jax.random.split(key)

    batch, input_dim, hidden = 8, 16, 32
    x = jax.random.normal(k_x, (batch, input_dim), jnp.float32)
    params = make_params(k_p, input_dim, hidden)

    out = l0_mlp_forward(x, params)
    out = jax.block_until_ready(out)

    ref = l0_mlp_reference(x, params)
    assert out.shape == (batch, input_dim)
    # bf16 MXU operands + approx reciprocal -> tolerance loosened vs the f32 reference.
    assert jnp.allclose(out, ref, atol=5e-2, rtol=5e-2), "Pallas output mismatch vs reference"

    print("KERNEL_OK")
</pallas_src>

<mosaic_0001>
module attributes {stable_mosaic.version = 11 : i64} {
  func.func @l0_mlp_kernel(%arg0: i32, %arg1: memref<8x128xf32, #tpu.memory_space<vmem>>, %arg2: memref<128x128xbf16, #tpu.memory_space<vmem>>, %arg3: memref<1x128xf32, #tpu.memory_space<vmem>>, %arg4: memref<128x128xbf16, #tpu.memory_space<vmem>>, %arg5: memref<1x128xf32, #tpu.memory_space<vmem>>, %arg6: memref<256x128xbf16, #tpu.memory_space<vmem>>, %arg7: memref<1x128xf32, #tpu.memory_space<vmem>>, %arg8: memref<8x128xf32, #tpu.memory_space<vmem>>) attributes {dimension_semantics = [#tpu.dimension_semantics<parallel>], iteration_bounds = array<i64: 1>, scalar_prefetch = 0 : i64, scratch_operands = 0 : i64, tpu.core_type = #tpu.core_type<tc>, window_params = [{transform_indices = @transform_0, window_bounds = array<i64: 8, 128>}, {pipeline_mode = #tpu.pipeline_mode<synchronous>, transform_indices = @transform_1, window_bounds = array<i64: 128, 128>}, {pipeline_mode = #tpu.pipeline_mode<synchronous>, transform_indices = @transform_2, window_bounds = array<i64: 1, 128>}, {pipeline_mode = #tpu.pipeline_mode<synchronous>, transform_indices = @transform_3, window_bounds = array<i64: 128, 128>}, {pipeline_mode = #tpu.pipeline_mode<synchronous>, transform_indices = @transform_4, window_bounds = array<i64: 1, 128>}, {pipeline_mode = #tpu.pipeline_mode<synchronous>, transform_indices = @transform_5, window_bounds = array<i64: 256, 128>}, {pipeline_mode = #tpu.pipeline_mode<synchronous>, transform_indices = @transform_6, window_bounds = array<i64: 1, 128>}, {transform_indices = @transform_7, window_bounds = array<i64: 8, 128>}]} {
    %c0 = arith.constant 0 : index
    %c0_0 = arith.constant 0 : index
    %0 = vector.load %arg1[%c0, %c0_0] : memref<8x128xf32, #tpu.memory_space<vmem>>, vector<8x128xf32>
    %cst = arith.constant 5.000000e-01 : f32
    %1 = vector.broadcast %cst : f32 to vector<8x128xf32>
    %2 = arith.subf %0, %1 : vector<8x128xf32>
    %3 = math.absf %2 : vector<8x128xf32>
    %cst_1 = arith.constant 1.000000e+00 : f32
    %4 = vector.broadcast %cst_1 : f32 to vector<8x128xf32>
    %5 = arith.addf %4, %3 : vector<8x128xf32>
    %6 = tpu.reciprocal %5 {approx = true} : vector<8x128xf32> -> vector<8x128xf32>
    %7 = arith.mulf %2, %6 : vector<8x128xf32>
    %8 = math.log1p %7 : vector<8x128xf32>
    %9 = arith.truncf %7 : vector<8x128xf32> to vector<8x128xbf16>
    %c0_2 = arith.constant 0 : index
    %c0_3 = arith.constant 0 : index
    %10 = vector.load %arg2[%c0_2, %c0_3] : memref<128x128xbf16, #tpu.memory_space<vmem>>, vector<128x128xbf16>
    %cst_4 = arith.constant dense<0.000000e+00> : vector<8x128xf32>
    %11 = tpu.matmul %9, %10, %cst_4 {dimension_numbers = #tpu.dot_dimension_numbers<[1], [0], [0], [1], [0, 0, 1, 1], [], []>} : vector<8x128xbf16>, vector<128x128xbf16>, vector<8x128xf32> -> vector<8x128xf32>
    %c0_5 = arith.constant 0 : index
    %c0_6 = arith.constant 0 : index
    %12 = vector.load %arg3[%c0_5, %c0_6] : memref<1x128xf32, #tpu.memory_space<vmem>>, vector<1x128xf32>
    %13 = vector.broadcast %12 : vector<1x128xf32> to vector<8x128xf32>
    %14 = arith.addf %11, %13 : vector<8x128xf32>
    %15 = arith.truncf %8 : vector<8x128xf32> to vector<8x128xbf16>
    %c0_7 = arith.constant 0 : index
    %c0_8 = arith.constant 0 : index
    %16 = vector.load %arg4[%c0_7, %c0_8] : memref<128x128xbf16, #tpu.memory_space<vmem>>, vector<128x128xbf16>
    %cst_9 = arith.constant dense<0.000000e+00> : vector<8x128xf32>
    %17 = tpu.matmul %15, %16, %cst_9 {dimension_numbers = #tpu.dot_dimension_numbers<[1], [0], [0], [1], [0, 0, 1, 1], [], []>} : vector<8x128xbf16>, vector<128x128xbf16>, vector<8x128xf32> -> vector<8x128xf32>
    %c0_10 = arith.constant 0 : index
    %c0_11 = arith.constant 0 : index
    %18 = vector.load %arg5[%c0_10, %c0_11] : memref<1x128xf32, #tpu.memory_space<vmem>>, vector<1x128xf32>
    %19 = vector.broadcast %18 : vector<1x128xf32> to vector<8x128xf32>
    %20 = arith.addf %17, %19 : vector<8x128xf32>
    %21 = math.exp %20 : vector<8x128xf32>
    %22 = tpu.concatenate %14, %21 in 1 : vector<8x128xf32>, vector<8x128xf32> -> vector<8x256xf32>
    %23 = arith.truncf %22 : vector<8x256xf32> to vector<8x256xbf16>
    %c0_12 = arith.constant 0 : index
    %c0_13 = arith.constant 0 : index
    %24 = vector.load %arg6[%c0_12, %c0_13] : memref<256x128xbf16, #tpu.memory_space<vmem>>, vector<256x128xbf16>
    %cst_14 = arith.constant dense<0.000000e+00> : vector<8x128xf32>
    %25 = tpu.matmul %23, %24, %cst_14 {dimension_numbers = #tpu.dot_dimension_numbers<[1], [0], [0], [1], [0, 0, 1, 1], [], []>} : vector<8x256xbf16>, vector<256x128xbf16>, vector<8x128xf32> -> vector<8x128xf32>
    %c0_15 = arith.constant 0 : index
    %c0_16 = arith.constant 0 : index
    %26 = vector.load %arg7[%c0_15, %c0_16] : memref<1x128xf32, #tpu.memory_space<vmem>>, vector<1x128xf32>
    %27 = arith.subf %25, %0 : vector<8x128xf32>
    %28 = vector.broadcast %26 : vector<1x128xf32> to vector<8x128xf32>
    %29 = arith.mulf %28, %27 : vector<8x128xf32>
    %c0_17 = arith.constant 0 : index
    %c0_18 = arith.constant 0 : index
    %30 = vector.load %arg8[%c0_17, %c0_18] : memref<8x128xf32, #tpu.memory_space<vmem>>, vector<8x128xf32>
    tpu.vector_store %arg8[%c0_17, %c0_18], %29 {strides = array<i32>} : memref<8x128xf32, #tpu.memory_space<vmem>>, vector<8x128xf32>,
    return
  }
  func.func @transform_0(%arg0: i32) -> (i32, i32) {
    %c0_i32 = arith.constant 0 : i32
    %c0_i32_0 = arith.constant 0 : i32
    return %arg0, %c0_i32 : i32, i32
  }
  func.func @transform_1(%arg0: i32) -> (i32, i32) {
    %c0_i32 = arith.constant 0 : i32
    %c0_i32_0 = arith.constant 0 : i32
    %c0_i32_1 = arith.constant 0 : i32
    return %c0_i32, %c0_i32_0 : i32, i32
  }
  func.func @transform_2(%arg0: i32) -> (i32, i32) {
    %c0_i32 = arith.constant 0 : i32
    %c0_i32_0 = arith.constant 0 : i32
    %c0_i32_1 = arith.constant 0 : i32
    return %c0_i32, %c0_i32_0 : i32, i32
  }
  func.func @transform_3(%arg0: i32) -> (i32, i32) {
    %c0_i32 = arith.constant 0 : i32
    %c0_i32_0 = arith.constant 0 : i32
    %c0_i32_1 = arith.constant 0 : i32
    return %c0_i32, %c0_i32_0 : i32, i32
  }
  func.func @transform_4(%arg0: i32) -> (i32, i32) {
    %c0_i32 = arith.constant 0 : i32
    %c0_i32_0 = arith.constant 0 : i32
    %c0_i32_1 = arith.constant 0 : i32
    return %c0_i32, %c0_i32_0 : i32, i32
  }
  func.func @transform_5(%arg0: i32) -> (i32, i32) {
    %c0_i32 = arith.constant 0 : i32
    %c0_i32_0 = arith.constant 0 : i32
    %c0_i32_1 = arith.constant 0 : i32
    return %c0_i32, %c0_i32_0 : i32, i32
  }
  func.func @transform_6(%arg0: i32) -> (i32, i32) {
    %c0_i32 = arith.constant 0 : i32
    %c0_i32_0 = arith.constant 0 : i32
    %c0_i32_1 = arith.constant 0 : i32
    return %c0_i32, %c0_i32_0 : i32, i32
  }
  func.func @transform_7(%arg0: i32) -> (i32, i32) {
    %c0_i32 = arith.constant 0 : i32
    %c0_i32_0 = arith.constant 0 : i32
    return %arg0, %c0_i32 : i32, i32
  }
}

</mosaic_0001>

<llo_original>
// kernel: tpu_custom_call.1
$region0: #{tpu_custom_call.1}
  #allocation0 [shape = 'u32[]', space=smem, size = 0x4, offset = 0x4, fixed_abs, tag = 'smem constant byte address 0x4 - core index']
  #allocation1 [shape = 'u32[144,128]{1,0:T(1,128)}', space=vmem, size = 0x12000, scoped, tag = 'internal scratch']
  %s0 = inlined_call_operand.hbm [shape: f32[8,128], index: 0, kind: input, shape index: {}]
  %s1 = inlined_call_operand.hbm [shape: bf16[128,128], index: 1, kind: input, shape index: {}]
  %s2 = inlined_call_operand.vmem [shape: f32[1,128], index: 2, kind: input, shape index: {}]
  %s3 = inlined_call_operand.hbm [shape: bf16[128,128], index: 3, kind: input, shape index: {}]
  %s4 = inlined_call_operand.vmem [shape: f32[1,128], index: 4, kind: input, shape index: {}]
  %s5 = inlined_call_operand.hbm [shape: bf16[256,128], index: 5, kind: input, shape index: {}]
  %s6 = inlined_call_operand.vmem [shape: f32[1,128], index: 6, kind: input, shape index: {}]
  %s7 = inlined_call_operand.hbm [shape: f32[8,128], index: 7, kind: output, shape index: {}]
  %s8 = sld [smem:[#allocation0]]
  $region54: #{tpu_custom_call.1} parent=0
    _
  %s10 = ssub.s32 1, %s8
  %s11 = scalar_select 0, %s10, %s8
  $region1: #{tpu_custom_call.1} parent=0
    #allocation2 [shape = 'u8[4096]{0}', space=vmem, size = 0x1000, scoped, tag = 'input window, operand 0, single buffered']
    #allocation3 [shape = 's32[1]{0}', space=sflag, size = 0x4, scoped, tag = 'scoped memory for tpu_custom_call.1']
    #allocation4 [shape = 's32[1]{0}', space=sflag, size = 0x4, scoped, tag = 'scoped memory for tpu_custom_call.1']
    #allocation5 [shape = 'u8[32768]{0}', space=vmem, size = 0x8000, scoped, tag = 'input window, operand 1, single buffered']
    #allocation6 [shape = 's32[1]{0}', space=sflag, size = 0x4, scoped, tag = 'scoped memory for tpu_custom_call.1']
    #allocation7 [shape = 'u8[32768]{0}', space=vmem, size = 0x8000, scoped, tag = 'input window, operand 3, single buffered']
    #allocation8 [shape = 'u8[65536]{0}', space=vmem, size = 0x10000, scoped, tag = 'input window, operand 5, single buffered']
    #allocation9 [shape = 's32[1]{0}', space=sflag, size = 0x4, scoped, tag = 'scoped memory for tpu_custom_call.1']
    #allocation10 [shape = 'u8[4096]{0}', space=vmem, size = 0x1000, scoped, tag = 'output window, operand 0, single buffered']
    %12 = vsyncpa [#allocation3], 0
    %13 = vsyncpa [#allocation6], 0
    %14 = vsyncpa [#allocation9], 0
    %15 = vsyncpa [#allocation4], 0
    // Predicated region
    $region2: #{tpu_custom_call.1} parent=1 // pred_check
      _
    $region3: #{tpu_custom_call.1} parent=1 // pred_check_branch
      %17 = sbr.rel (0) target = $region5
    $region4: #{tpu_custom_call.1} parent=1 // pred_region
      %s19 = ssub.s32 128, 128
      %20 = vsyncadd [#allocation3], %s19
      %s22 = sshll.u32 [#allocation2], 4
      %s23 = int_to_ptr.vmem [resolvable:$true] %s22
      %25 = dma.hbm_to_vmem [thread:$0]  %s0, 128, %s23, [#allocation3]
    $region5: #{tpu_custom_call.1} parent=1 // pred_fallthru
      _
    // Predicated region
    $region6: #{tpu_custom_call.1} parent=1 // pred_check
      _
    $region7: #{tpu_custom_call.1} parent=1 // pred_check_branch
      %27 = sbr.rel (0) target = $region9
    $region8: #{tpu_custom_call.1} parent=1 // pred_region
      %s29 = ssub.s32 1024, 1024
      %30 = vsyncadd [#allocation6], %s29
      %s31 = sshll.u32 [#allocation5], 4
      %s32 = int_to_ptr.vmem [resolvable:$true] %s31
      %37 = dma.hbm_to_vmem [thread:$0]  %s1, 1024, %s32, [#allocation6], 64, 64, 4
    $region9: #{tpu_custom_call.1} parent=1 // pred_fallthru
      _
    // Predicated region
    $region10: #{tpu_custom_call.1} parent=1 // pred_check
      _
    $region11: #{tpu_custom_call.1} parent=1 // pred_check_branch
      %39 = sbr.rel (0) target = $region13
    $region12: #{tpu_custom_call.1} parent=1 // pred_region
      _
    $region13: #{tpu_custom_call.1} parent=1 // pred_fallthru
      _
    // Predicated region
    $region14: #{tpu_custom_call.1} parent=1 // pred_check
      _
    $region15: #{tpu_custom_call.1} parent=1 // pred_check_branch
      %41 = sbr.rel (0) target = $region17
    $region16: #{tpu_custom_call.1} parent=1 // pred_region
      %s43 = ssub.s32 1024, 1024
      %44 = vsyncadd [#allocation6], %s43
      %s45 = sshll.u32 [#allocation7], 4
      %s46 = int_to_ptr.vmem [resolvable:$true] %s45
      %51 = dma.hbm_to_vmem [thread:$0]  %s3, 1024, %s46, [#allocation6], 64, 64, 4
    $region17: #{tpu_custom_call.1} parent=1 // pred_fallthru
      _
    // Predicated region
    $region18: #{tpu_custom_call.1} parent=1 // pred_check
      _
    $region19: #{tpu_custom_call.1} parent=1 // pred_check_branch
      %53 = sbr.rel (0) target = $region21
    $region20: #{tpu_custom_call.1} parent=1 // pred_region
      _
    $region21: #{tpu_custom_call.1} parent=1 // pred_fallthru
      _
    // Predicated region
    $region22: #{tpu_custom_call.1} parent=1 // pred_check
      _
    $region23: #{tpu_custom_call.1} parent=1 // pred_check_branch
      %55 = sbr.rel (0) target = $region25
    $region24: #{tpu_custom_call.1} parent=1 // pred_region
      %s57 = ssub.s32 2048, 2048
      %58 = vsyncadd [#allocation9], %s57
      %s59 = sshll.u32 [#allocation8], 4
      %s60 = int_to_ptr.vmem [resolvable:$true] %s59
      %65 = dma.hbm_to_vmem [thread:$0]  %s5, 2048, %s60, [#allocation9], 64, 64, 4
    $region25: #{tpu_custom_call.1} parent=1 // pred_fallthru
      _
    // Predicated region
    $region26: #{tpu_custom_call.1} parent=1 // pred_check
      _
    $region27: #{tpu_custom_call.1} parent=1 // pred_check_branch
      %67 = sbr.rel (0) target = $region29
    $region28: #{tpu_custom_call.1} parent=1 // pred_region
      _
    $region29: #{tpu_custom_call.1} parent=1 // pred_fallthru
      _
    // Predicated region
    $region30: #{tpu_custom_call.1} parent=1 // pred_check
      _
    $region31: #{tpu_custom_call.1} parent=1 // pred_check_branch
      %69 = sbr.rel (0) target = $region33
    $region32: #{tpu_custom_call.1} parent=1 // pred_region
      %70 = dma.done [#allocation3], 128
    $region33: #{tpu_custom_call.1} parent=1 // pred_fallthru
      _
    // Predicated region
    $region34: #{tpu_custom_call.1} parent=1 // pred_check
      _
    $region35: #{tpu_custom_call.1} parent=1 // pred_check_branch
      %72 = sbr.rel (0) target = $region37
    $region36: #{tpu_custom_call.1} parent=1 // pred_region
      %73 = dma.done [#allocation6], 1024
    $region37: #{tpu_custom_call.1} parent=1 // pred_fallthru
      _
    // Predicated region
    $region38: #{tpu_custom_call.1} parent=1 // pred_check
      _
    $region39: #{tpu_custom_call.1} parent=1 // pred_check_branch
      %75 = sbr.rel (0) target = $region41
    $region40: #{tpu_custom_call.1} parent=1 // pred_region
      %76 = dma.done [#allocation6], 1024
    $region41: #{tpu_custom_call.1} parent=1 // pred_fallthru
      _
    // Predicated region
    $region42: #{tpu_custom_call.1} parent=1 // pred_check
      _
    $region43: #{tpu_custom_call.1} parent=1 // pred_check_branch
      %78 = sbr.rel (0) target = $region45
    $region44: #{tpu_custom_call.1} parent=1 // pred_region
      %79 = dma.done [#allocation9], 2048
    $region45: #{tpu_custom_call.1} parent=1 // pred_fallthru
      _
    %v81 = vld [vmem:[#allocation2] sm:$0xff]
    %v82 = vsub.f32 %v81, 0.5
    %v83 = vand.u32 2147483647, %v82
    %v84 = vadd.f32 %v83, 1.0
    %v85 = vrcp.pop %v84
    %v86 = vmul.f32 %v82, %v85
    %v87 = vadd.f32 %v86, 1.0
    %v88 = vlog2.pop %v87
    %v89 = vmul.f32 %v88, 0.6931472
    %v90 = vmul.f32 -0.5, %v86
    %v91 = vadd.f32 %v90, 1.0
    %v92 = vmul.f32 %v91, %v86
    %v93 = vand.u32 2147483647, %v86
    %vm94 = vcmp.lt.f32.partialorder %v93, 0.0004427343
    %v95 = vsel %vm94, %v92, %v89
    %v96 = vpack.c.bf16 %v86, %v86
    %v97 = vld [vmem:[#allocation5] sm:$0xf]
    %v98 = vld [vmem:[#allocation5 + $0x4] sm:$0xf]
    %v99 = vld [vmem:[#allocation5 + $0x8] sm:$0xf]
    %v100 = vld [vmem:[#allocation5 + $0xc] sm:$0xf]
    %v101 = vld [vmem:[#allocation5 + $0x10] sm:$0xf]
    %v102 = vld [vmem:[#allocation5 + $0x14] sm:$0xf]
    %v103 = vld [vmem:[#allocation5 + $0x18] sm:$0xf]
    %v104 = vld [vmem:[#allocation5 + $0x1c] sm:$0xf]
    %v105 = vld [vmem:[#allocation5 + $0x20] sm:$0xf]
    %v106 = vld [vmem:[#allocation5 + $0x24] sm:$0xf]
    %v107 = vld [vmem:[#allocation5 + $0x28] sm:$0xf]
    %v108 = vld [vmem:[#allocation5 + $0x2c] sm:$0xf]
    %v109 = vld [vmem:[#allocation5 + $0x30] sm:$0xf]
    %v110 = vld [vmem:[#allocation5 + $0x34] sm:$0xf]
    %v111 = vld [vmem:[#allocation5 + $0x38] sm:$0xf]
    %v112 = vld [vmem:[#allocation5 + $0x3c] sm:$0xf]
    %v113 = vld [vmem:[%s2] sm:$0x1]
    %v115 = vlaneseq
    %v116 = vshrl.u32 %v115, 7
    %v117 = vsub.s32 0, %v116
    %v118 = vrot.slane %v113, %v117
    %v136 = vunpack.c.l.b16 %v97
    %v137 = vunpack.c.l.b16 %v98
    %v138 = vunpack.c.l.b16 %v99
    %v139 = vunpack.c.l.b16 %v100
    %v140 = vunpack.c.l.b16 %v101
    %v141 = vunpack.c.l.b16 %v102
    %v142 = vunpack.c.l.b16 %v103
    %v143 = vunpack.c.l.b16 %v104
    %v144 = vunpack.c.l.b16 %v105
    %v145 = vunpack.c.l.b16 %v106
    %v146 = vunpack.c.l.b16 %v107
    %v147 = vunpack.c.l.b16 %v108
    %v148 = vunpack.c.l.b16 %v109
    %v149 = vunpack.c.l.b16 %v110
    %v150 = vunpack.c.l.b16 %v111
    %v151 = vunpack.c.l.b16 %v112
    %v152 = vpack.c.b16 %v137, %v136
    %v153 = vpack.c.b16 %v139, %v138
    %v154 = vpack.c.b16 %v141, %v140
    %v155 = vpack.c.b16 %v143, %v142
    %v156 = vpack.c.b16 %v145, %v144
    %v157 = vpack.c.b16 %v147, %v146
    %v158 = vpack.c.b16 %v149, %v148
    %v159 = vpack.c.b16 %v151, %v150
    %168 = vmatprep.subr.bf16.mxu0 0
    %169 = vmatpush1.bf16.msra.mxu0 %v152
    %170 = vmatprep.subr.bf16.mxu0 0
    %171 = vmatpush1.bf16.msra.mxu0 %v153
    %172 = vmatprep.subr.bf16.mxu0 0
    %173 = vmatpush1.bf16.msra.mxu0 %v154
    %174 = vmatprep.subr.bf16.mxu0 0
    %175 = vmatpush1.bf16.msra.mxu0 %v155
    %176 = vmatprep.subr.bf16.mxu0 0
    %177 = vmatpush1.bf16.msra.mxu0 %v156
    %178 = vmatprep.subr.bf16.mxu0 0
    %179 = vmatpush1.bf16.msra.mxu0 %v157
    %180 = vmatprep.subr.bf16.mxu0 0
    %181 = vmatpush1.bf16.msra.mxu0 %v158
    %182 = vmatprep.subr.bf16.mxu0 0
    %183 = vmatpush1.bf16.msra.mxu0 %v159
    %184 = vmatprep.subr.bf16.mxu0 0
    %185 = vmatpush1.bf16.msra.mxu0 0
    %186 = vmatprep.subr.bf16.mxu0 0
    %187 = vmatpush1.bf16.msra.mxu0 0
    %188 = vmatprep.subr.bf16.mxu0 0
    %189 = vmatpush1.bf16.msra.mxu0 0
    %190 = vmatprep.subr.bf16.mxu0 0
    %191 = vmatpush1.bf16.msra.mxu0 0
    %192 = vmatprep.subr.bf16.mxu0 0
    %193 = vmatpush1.bf16.msra.mxu0 0
    %194 = vmatprep.subr.bf16.mxu0 0
    %195 = vmatpush1.bf16.msra.mxu0 0
    %196 = vmatprep.subr.bf16.mxu0 0
    %197 = vmatpush1.bf16.msra.mxu0 0
    %198 = vmatprep.subr.bf16.mxu0 0
    %199 = vmatpush1.bf16.msra.mxu0 0
    %200 = vmatprep.mubr.bf16.mxu0 0
    %201 = vmatmul.mubr.bf16.gmra.mrb[0].mxu0 %v96
    %v202 = vpop.f32.mrb[0].mxu0
    %v203 = vadd.f32 %v118, %v202
    %v204 = vpop.f32.mrb[0].mxu0
    %v205 = vpop.f32.mrb[0].mxu0
    %v206 = vpop.f32.mrb[0].mxu0
    %207 = vdwg.mxu0
    %v208 = vpack.c.bf16 %v95, %v95
    %v209 = vld [vmem:[#allocation7] sm:$0xf]
    %v210 = vld [vmem:[#allocation7 + $0x4] sm:$0xf]
    %v211 = vld [vmem:[#allocation7 + $0x8] sm:$0xf]
    %v212 = vld [vmem:[#allocation7 + $0xc] sm:$0xf]
    %v213 = vld [vmem:[#allocation7 + $0x10] sm:$0xf]
    %v214 = vld [vmem:[#allocation7 + $0x14] sm:$0xf]
    %v215 = vld [vmem:[#allocation7 + $0x18] sm:$0xf]
    %v216 = vld [vmem:[#allocation7 + $0x1c] sm:$0xf]
    %v217 = vld [vmem:[#allocation7 + $0x20] sm:$0xf]
    %v218 = vld [vmem:[#allocation7 + $0x24] sm:$0xf]
    %v219 = vld [vmem:[#allocation7 + $0x28] sm:$0xf]
    %v220 = vld [vmem:[#allocation7 + $0x2c] sm:$0xf]
    %v221 = vld [vmem:[#allocation7 + $0x30] sm:$0xf]
    %v222 = vld [vmem:[#allocation7 + $0x34] sm:$0xf]
    %v223 = vld [vmem:[#allocation7 + $0x38] sm:$0xf]
    %v224 = vld [vmem:[#allocation7 + $0x3c] sm:$0xf]
    %v225 = vld [vmem:[%s4] sm:$0x1]
    %v227 = vlaneseq
    %v228 = vshrl.u32 %v227, 7
    %v229 = vsub.s32 0, %v228
    %v230 = vrot.slane %v225, %v229
    %v248 = vunpack.c.l.b16 %v209
    %v249 = vunpack.c.l.b16 %v210
    %v250 = vunpack.c.l.b16 %v211
    %v251 = vunpack.c.l.b16 %v212
    %v252 = vunpack.c.l.b16 %v213
    %v253 = vunpack.c.l.b16 %v214
    %v254 = vunpack.c.l.b16 %v215
    %v255 = vunpack.c.l.b16 %v216
    %v256 = vunpack.c.l.b16 %v217
    %v257 = vunpack.c.l.b16 %v218
    %v258 = vunpack.c.l.b16 %v219
    %v259 = vunpack.c.l.b16 %v220
    %v260 = vunpack.c.l.b16 %v221
    %v261 = vunpack.c.l.b16 %v222
    %v262 = vunpack.c.l.b16 %v223
    %v263 = vunpack.c.l.b16 %v224
    %v264 = vpack.c.b16 %v249, %v248
    %v265 = vpack.c.b16 %v251, %v250
    %v266 = vpack.c.b16 %v253, %v252
    %v267 = vpack.c.b16 %v255, %v254
    %v268 = vpack.c.b16 %v257, %v256
    %v269 = vpack.c.b16 %v259, %v258
    %v270 = vpack.c.b16 %v261, %v260
    %v271 = vpack.c.b16 %v263, %v262
    %280 = vmatprep.subr.bf16.mxu0 0
    %281 = vmatpush1.bf16.msra.mxu0 %v264
    %282 = vmatprep.subr.bf16.mxu0 0
    %283 = vmatpush1.bf16.msra.mxu0 %v265
    %284 = vmatprep.subr.bf16.mxu0 0
    %285 = vmatpush1.bf16.msra.mxu0 %v266
    %286 = vmatprep.subr.bf16.mxu0 0
    %287 = vmatpush1.bf16.msra.mxu0 %v267
    %288 = vmatprep.subr.bf16.mxu0 0
    %289 = vmatpush1.bf16.msra.mxu0 %v268
    %290 = vmatprep.subr.bf16.mxu0 0
    %291 = vmatpush1.bf16.msra.mxu0 %v269
    %292 = vmatprep.subr.bf16.mxu0 0
    %293 = vmatpush1.bf16.msra.mxu0 %v270
    %294 = vmatprep.subr.bf16.mxu0 0
    %295 = vmatpush1.bf16.msra.mxu0 %v271
    %296 = vmatprep.subr.bf16.mxu0 0
    %297 = vmatpush1.bf16.msra.mxu0 0
    %298 = vmatprep.subr.bf16.mxu0 0
    %299 = vmatpush1.bf16.msra.mxu0 0
    %300 = vmatprep.subr.bf16.mxu0 0
    %301 = vmatpush1.bf16.msra.mxu0 0
    %302 = vmatprep.subr.bf16.mxu0 0
    %303 = vmatpush1.bf16.msra.mxu0 0
    %304 = vmatprep.subr.bf16.mxu0 0
    %305 = vmatpush1.bf16.msra.mxu0 0
    %306 = vmatprep.subr.bf16.mxu0 0
    %307 = vmatpush1.bf16.msra.mxu0 0
    %308 = vmatprep.subr.bf16.mxu0 0
    %309 = vmatpush1.bf16.msra.mxu0 0
    %310 = vmatprep.subr.bf16.mxu0 0
    %311 = vmatpush1.bf16.msra.mxu0 0
    %312 = vmatprep.mubr.bf16.mxu0 0
    %313 = vmatmul.mubr.bf16.gmra.mrb[0].mxu0 %v208
    %v314 = vpop.f32.mrb[0].mxu0
    %v315 = vadd.f32 %v230, %v314
    %v316 = vpop.f32.mrb[0].mxu0
    %v317 = vpop.f32.mrb[0].mxu0
    %v318 = vpop.f32.mrb[0].mxu0
    %319 = vdwg.mxu0
    %v320 = vmul.f32 %v315, 1.442695
    %v321 = vpow.pop %v320
    %v322 = vpack.c.bf16 %v203, %v203
    %v323 = vpack.c.bf16 %v321, %v321
    %v324 = vld [vmem:[#allocation8] sm:$0xf]
    %v325 = vld [vmem:[#allocation8 + $0x4] sm:$0xf]
    %v326 = vld [vmem:[#allocation8 + $0x8] sm:$0xf]
    %v327 = vld [vmem:[#allocation8 + $0xc] sm:$0xf]
    %v328 = vld [vmem:[#allocation8 + $0x10] sm:$0xf]
    %v329 = vld [vmem:[#allocation8 + $0x14] sm:$0xf]
    %v330 = vld [vmem:[#allocation8 + $0x18] sm:$0xf]
    %v331 = vld [vmem:[#allocation8 + $0x1c] sm:$0xf]
    %v332 = vld [vmem:[#allocation8 + $0x20] sm:$0xf]
    %v333 = vld [vmem:[#allocation8 + $0x24] sm:$0xf]
    %v334 = vld [vmem:[#allocation8 + $0x28] sm:$0xf]
    %v335 = vld [vmem:[#allocation8 + $0x2c] sm:$0xf]
    %v336 = vld [vmem:[#allocation8 + $0x30] sm:$0xf]
    %v337 = vld [vmem:[#allocation8 + $0x34] sm:$0xf]
    %v338 = vld [vmem:[#allocation8 + $0x38] sm:$0xf]
    %v339 = vld [vmem:[#allocation8 + $0x3c] sm:$0xf]
    %v340 = vld [vmem:[#allocation8 + $0x40] sm:$0xf]
    %v341 = vld [vmem:[#allocation8 + $0x44] sm:$0xf]
    %v342 = vld [vmem:[#allocation8 + $0x48] sm:$0xf]
    %v343 = vld [vmem:[#allocation8 + $0x4c] sm:$0xf]
    %v344 = vld [vmem:[#allocation8 + $0x50] sm:$0xf]
    %v345 = vld [vmem:[#allocation8 + $0x54] sm:$0xf]
    %v346 = vld [vmem:[#allocation8 + $0x58] sm:$0xf]
    %v347 = vld [vmem:[#allocation8 + $0x5c] sm:$0xf]
    %v348 = vld [vmem:[#allocation8 + $0x60] sm:$0xf]
    %v349 = vld [vmem:[#allocation8 + $0x64] sm:$0xf]
    %v350 = vld [vmem:[#allocation8 + $0x68] sm:$0xf]
    %v351 = vld [vmem:[#allocation8 + $0x6c] sm:$0xf]
    %v352 = vld [vmem:[#allocation8 + $0x70] sm:$0xf]
    %v353 = vld [vmem:[#allocation8 + $0x74] sm:$0xf]
    %v354 = vld [vmem:[#allocation8 + $0x78] sm:$0xf]
    %v355 = vld [vmem:[#allocation8 + $0x7c] sm:$0xf]
    %v388 = vunpack.c.l.b16 %v324
    %v389 = vunpack.c.l.b16 %v325
    %v390 = vunpack.c.l.b16 %v326
    %v391 = vunpack.c.l.b16 %v327
    %v392 = vunpack.c.l.b16 %v328
    %v393 = vunpack.c.l.b16 %v329
    %v394 = vunpack.c.l.b16 %v330
    %v395 = vunpack.c.l.b16 %v331
    %v396 = vunpack.c.l.b16 %v332
    %v397 = vunpack.c.l.b16 %v333
    %v398 = vunpack.c.l.b16 %v334
    %v399 = vunpack.c.l.b16 %v335
    %v400 = vunpack.c.l.b16 %v336
    %v401 = vunpack.c.l.b16 %v337
    %v402 = vunpack.c.l.b16 %v338
    %v403 = vunpack.c.l.b16 %v339
    %v404 = vunpack.c.l.b16 %v340
    %v405 = vunpack.c.l.b16 %v341
    %v406 = vunpack.c.l.b16 %v342
    %v407 = vunpack.c.l.b16 %v343
    %v408 = vunpack.c.l.b16 %v344
    %v409 = vunpack.c.l.b16 %v345
    %v410 = vunpack.c.l.b16 %v346
    %v411 = vunpack.c.l.b16 %v347
    %v412 = vunpack.c.l.b16 %v348
    %v413 = vunpack.c.l.b16 %v349
    %v414 = vunpack.c.l.b16 %v350
    %v415 = vunpack.c.l.b16 %v351
    %v416 = vunpack.c.l.b16 %v352
    %v417 = vunpack.c.l.b16 %v353
    %v418 = vunpack.c.l.b16 %v354
    %v419 = vunpack.c.l.b16 %v355
    %v420 = vpack.c.b16 %v389, %v388
    %v421 = vpack.c.b16 %v391, %v390
    %v422 = vpack.c.b16 %v393, %v392
    %v423 = vpack.c.b16 %v395, %v394
    %v424 = vpack.c.b16 %v397, %v396
    %v425 = vpack.c.b16 %v399, %v398
    %v426 = vpack.c.b16 %v401, %v400
    %v427 = vpack.c.b16 %v403, %v402
    %v428 = vpack.c.b16 %v405, %v404
    %v429 = vpack.c.b16 %v407, %v406
    %v430 = vpack.c.b16 %v409, %v408
    %v431 = vpack.c.b16 %v411, %v410
    %v432 = vpack.c.b16 %v413, %v412
    %v433 = vpack.c.b16 %v415, %v414
    %v434 = vpack.c.b16 %v417, %v416
    %v435 = vpack.c.b16 %v419, %v418
    %452 = vmatprep.subr.bf16.mxu0 0
    %453 = vmatpush1.bf16.msra.mxu0 %v420
    %454 = vmatprep.subr.bf16.mxu0 0
    %455 = vmatpush1.bf16.msra.mxu0 %v421
    %456 = vmatprep.subr.bf16.mxu0 0
    %457 = vmatpush1.bf16.msra.mxu0 %v422
    %458 = vmatprep.subr.bf16.mxu0 0
    %459 = vmatpush1.bf16.msra.mxu0 %v423
    %460 = vmatprep.subr.bf16.mxu0 0
    %461 = vmatpush1.bf16.msra.mxu0 %v424
    %462 = vmatprep.subr.bf16.mxu0 0
    %463 = vmatpush1.bf16.msra.mxu0 %v425
    %464 = vmatprep.subr.bf16.mxu0 0
    %465 = vmatpush1.bf16.msra.mxu0 %v426
    %466 = vmatprep.subr.bf16.mxu0 0
    %467 = vmatpush1.bf16.msra.mxu0 %v427
    %468 = vmatprep.subr.bf16.mxu0 0
    %469 = vmatpush1.bf16.msra.mxu0 %v428
    %470 = vmatprep.subr.bf16.mxu0 0
    %471 = vmatpush1.bf16.msra.mxu0 %v429
    %472 = vmatprep.subr.bf16.mxu0 0
    %473 = vmatpush1.bf16.msra.mxu0 %v430
    %474 = vmatprep.subr.bf16.mxu0 0
    %475 = vmatpush1.bf16.msra.mxu0 %v431
    %476 = vmatprep.subr.bf16.mxu0 0
    %477 = vmatpush1.bf16.msra.mxu0 %v432
    %478 = vmatprep.subr.bf16.mxu0 0
    %479 = vmatpush1.bf16.msra.mxu0 %v433
    %480 = vmatprep.subr.bf16.mxu0 0
    %481 = vmatpush1.bf16.msra.mxu0 %v434
    %482 = vmatprep.subr.bf16.mxu0 0
    %483 = vmatpush1.bf16.msra.mxu0 %v435
    %484 = vmatprep.mubr.bf16.mxu0 %v323
    %485 = vmatmul.mubr.bf16.gmra.mrb[0].mxu0 %v322
    %v486 = vpop.f32.mrb[0].mxu0
    %v487 = vadd.f32 0.0, %v486
    %v488 = vpop.f32.mrb[0].mxu0
    %v489 = vpop.f32.mrb[0].mxu0
    %v490 = vpop.f32.mrb[0].mxu0
    %491 = vdwg.mxu0
    %v492 = vld [vmem:[%s6] sm:$0x1]
    %v493 = vsub.f32 %v487, %v81
    %v495 = vlaneseq
    %v496 = vshrl.u32 %v495, 7
    %v497 = vsub.s32 0, %v496
    %v498 = vrot.slane %v492, %v497
    %v500 = vmul.f32 %v498, %v493
    %501 = vst [vmem:[#allocation10] sm:$0xff] %v500
    // Predicated region
    $region46: #{tpu_custom_call.1} parent=1 // pred_check
      _
    $region47: #{tpu_custom_call.1} parent=1 // pred_check_branch
      %503 = sbr.rel (0) target = $region49
    $region48: #{tpu_custom_call.1} parent=1 // pred_region
      %s505 = ssub.s32 128, 128
      %506 = vsyncadd [#allocation4], %s505
      %s508 = sshll.u32 [#allocation10], 4
      %s509 = int_to_ptr.vmem [resolvable:$true] %s508
      %511 = dma.vmem_to_hbm [thread:$0]  %s509, 128, %s7, [#allocation4]
    $region49: #{tpu_custom_call.1} parent=1 // pred_fallthru
      _
    // Predicated region
    $region50: #{tpu_custom_call.1} parent=1 // pred_check
      _
    $region51: #{tpu_custom_call.1} parent=1 // pred_check_branch
      %513 = sbr.rel (0) target = $region53
    $region52: #{tpu_custom_call.1} parent=1 // pred_region
      %514 = dma.done [#allocation4], 128
    $region53: #{tpu_custom_call.1} parent=1 // pred_fallthru
      _
    %515 = vsyncpa [#allocation3], 1
    %516 = vsyncpa [#allocation6], 1
    %517 = vsyncpa [#allocation9], 1
    %518 = vsyncpa [#allocation4], 1

</llo_original>
